<compile_context>
chip_gen: v7x
topology: tpu7x:2x2x1
jax: 0.10.0
libtpu: 0.0.40
codegen_flags: <defaults>
</compile_context>

<pallas_src>
import functools
import math

import jax
import jax.numpy as jnp
from jax import lax
from jax.experimental import pallas as pl
from jax.experimental.pallas import tpu as pltpu

LANES = 128          # pad every feature dim to a multiple of the 128-lane vreg
SUBLANES = 8         # f32 sublane quantum: pad batch rows to a multiple of 8
BN_EPS = 1e-5        # nn.BatchNorm1d default
MATMUL_DTYPE = jnp.bfloat16   # MXU-native; set jnp.float32 for bit-closer
                              # parity with PyTorch f32 Linear (costs ~nothing
                              # here, the kernel is overhead-bound).


def _round_up(x, m):
    return (x + m - 1) // m * m


def _pad2(a, rows, cols):
    a = jnp.asarray(a, jnp.float32)
    if a.ndim == 1:
        a = a.reshape(1, -1)
    return jnp.pad(a, ((0, rows - a.shape[0]), (0, cols - a.shape[1])))


# ------------------------------ fused kernel -------------------------------

def _fused_mlp_kernel(xq_ref, temb_ref, wslab_ref, wtall_ref, vslab_ref, out_ref,
                      *, spec, batch, eps=BN_EPS):
    """Entire SimpleMLP forward on whole-array VMEM slabs (no grid).

    xq_ref   : (BPAD, pad_in)  bf16 activations (X|Q concat, natural layout)
    temb_ref : (BPAD, pad_t)   bf16 sinusoidal embeddings
    wslab_ref: (R, W)          bf16 slab of all (in,out) weight matrices
    wtall_ref: (pad_t, TW)     bf16 horizontal concat of all layers' time_mlp W
    vslab_ref: (V, VW)         f32 slab: one bias / BN vector per row
    out_ref  : (BPAD, p_out)   f32 lane-dense output
    """
    L = spec["num_layers"]
    pad_t, pad_in, p_out = spec["pad_t"], spec["pad_in"], spec["p_out"]
    pad_h = spec["pad_h"]
    woff, vrow_i = spec["w_off"], spec["v_row"]
    tcol, TW = spec["t_col_off"], spec["t_width"]
    wd = wslab_ref.dtype

    bpad = xq_ref.shape[0]
    # Rows >= batch are zero padding; keep them out of the BatchNorm statistics.
    row_mask = (lax.broadcasted_iota(jnp.int32, (bpad, 1), 0) < batch
                ).astype(jnp.float32)
    inv_b = 1.0 / float(batch)

    def wblk(name, rows, cols):                 # static, tile-aligned slice
        off = woff[name]
        return wslab_ref[off:off + rows, 0:cols]

    def vrow(name, width):                      # (1, width) f32 vector
        r = vrow_i[name]
        return vslab_ref[r:r + 1, 0:width]

    def dot(a, w):
        return jnp.dot(a, w, preferred_element_type=jnp.float32)

    def batchnorm(h, g, be):
        # nn.BatchNorm1d training mode: biased batch stats over real rows only.
        hm = h * row_mask
        mu = jnp.sum(hm, axis=0, keepdims=True) * inv_b
        var = jnp.maximum(
            jnp.sum(hm * hm, axis=0, keepdims=True) * inv_b - mu * mu, 0.0)
        scale = g * lax.rsqrt(var + eps)        # EUP slot (free-ish)
        shift = be - mu * scale
        return h * scale + shift                # single FMA on the big tile

    # Time branch (loop-invariant, hoisted): t = ReLU(Linear(sin-emb));
    # then ALL layers' ReLU(time_mlp(t)) in one wide matmul.
    t = jnp.maximum(
        dot(temb_ref[...], wblk("time", pad_t, pad_t)) + vrow("btime", pad_t), 0.0)
    t_all = jnp.maximum(
        dot(t.astype(wd), wtall_ref[...]) + vrow("bt_all", TW), 0.0)

    # fc0: torch's permute(0,2,1).flatten(1) is baked into the weight row order;
    # X/Q concat was done (lane-contiguously) in the wrapper -> single matmul.
    h = dot(xq_ref[...], wblk("xq", pad_in, pad_h[0])) + vrow("b0", pad_h[0])

    # MLP blocks (statically unrolled; num_layers is tiny).
    for i in range(L):
        din, dout = pad_h[i], pad_h[i + 1]
        z = jnp.maximum(dot(h.astype(wd), wblk(f"w1_{i}", din, dout))
                        + vrow(f"b1_{i}", dout), 0.0)
        z = batchnorm(z, vrow(f"g1_{i}", dout), vrow(f"be1_{i}", dout))
        z = z + t_all[:, tcol[i]:tcol[i] + dout]
        z = jnp.maximum(dot(z.astype(wd), wblk(f"w2_{i}", dout, dout))
                        + vrow(f"b2_{i}", dout), 0.0)
        h = batchnorm(z, vrow(f"g2_{i}", dout), vrow(f"be2_{i}", dout))

    # Output linear; lane-dense (padded-to-128) unmasked store.
    out_ref[...] = dot(h.astype(wd), wblk("out", pad_h[L], p_out)) \
        + vrow("bout", p_out)


# ------------------------------ wrapper (JAX) -------------------------------

def simple_mlp_forward(arrays, X, Q, timestep, *, spec):
    """Fused-kernel forward. X:(B,F,J,3), Q:(B,F,J,4), timestep:(B,) -> (B,7,F*J)."""
    B, frames, joints, _ = X.shape
    FJ = frames * joints
    out_dim = spec["out_dim"]
    pad_in, pad_t, p_out = spec["pad_in"], spec["pad_t"], spec["p_out"]
    pad_h = spec["pad_h"]
    time_emb_dim = spec["time_emb_dim"]
    L = spec["num_layers"]
    BPAD = _round_up(B, SUBLANES)
    wd = arrays["wslab"].dtype
    half = time_emb_dim // 2

    # Sinusoidal position embedding (tiny; fuses into one XLA op under jit).
    freqs = jnp.exp(jnp.arange(half, dtype=jnp.float32)
                    * -(math.log(10000.0) / (half - 1)))
    ang = timestep.astype(jnp.float32)[:, None] * freqs[None, :]
    temb = jnp.concatenate([jnp.sin(ang), jnp.cos(ang)], axis=-1)
    temb = jnp.pad(temb, ((0, BPAD - B), (0, pad_t - time_emb_dim))).astype(wd)

    # X and Q in their natural contiguous layouts; single lane-contiguous concat.
    xq = jnp.concatenate([X.reshape(B, FJ * 3), Q.reshape(B, FJ * 4)],
                         axis=-1).astype(jnp.float32)
    xq = jnp.pad(xq, ((0, BPAD - B), (0, pad_in - 7 * FJ))).astype(wd)

    inputs = [xq, temb, arrays["wslab"], arrays["wtall"], arrays["vslab"]]

    macs = (pad_t * pad_t + pad_in * pad_h[0] + pad_t * spec["t_width"]
            + sum(pad_h[i] * pad_h[i + 1] + pad_h[i + 1] * pad_h[i + 1]
                  for i in range(L))
            + pad_h[L] * p_out)
    cost = pl.CostEstimate(
        flops=int(2 * BPAD * macs),
        transcendentals=int(2 * sum(pad_h[i + 1] for i in range(L))),
        bytes_accessed=int(sum(a.size * a.dtype.itemsize for a in inputs)
                           + BPAD * p_out * 4),
    )

    vmem = pl.BlockSpec(memory_space=pltpu.MemorySpace.VMEM)
    out_padded = pl.pallas_call(
        functools.partial(_fused_mlp_kernel, spec=spec, batch=B),
        out_shape=jax.ShapeDtypeStruct((BPAD, p_out), jnp.float32),
        in_specs=[vmem] * len(inputs),
        out_specs=vmem,
        cost_estimate=cost,
    )(*inputs)
    return out_padded[:B, :out_dim].reshape(B, 7, FJ)


# ------------------------ params: init / pack (convert once) ----------------

def _init_linear(key, fan_in, fan_out):
    # Deterministic stand-in for PyTorch's default nn.Linear init.
    kw, kb = jax.random.split(key)
    bound = 1.0 / math.sqrt(fan_in)
    w = jax.random.uniform(kw, (fan_in, fan_out), jnp.float32, -bound, bound)
    b = jax.random.uniform(kb, (fan_out,), jnp.float32, -bound, bound)
    return w, b


def init_simple_mlp(key, time_emb_dim, window, n_joints, hidden_dims):
    """Unpadded, (in, out)-layout parameters mirroring the PyTorch module."""
    in_dim = window * n_joints * 7
    keys = jax.random.split(key, 3 + 3 * (len(hidden_dims) - 1))
    ki = iter(keys)
    params = {}
    params["time_w"], params["time_b"] = _init_linear(next(ki), time_emb_dim, time_emb_dim)
    params["fc0_w"], params["fc0_b"] = _init_linear(next(ki), in_dim, hidden_dims[0])
    layers = []
    for i in range(len(hidden_dims) - 1):
        din, dout = hidden_dims[i], hidden_dims[i + 1]
        lp = {}
        lp["fc1_w"], lp["fc1_b"] = _init_linear(next(ki), din, dout)
        lp["fc2_w"], lp["fc2_b"] = _init_linear(next(ki), dout, dout)
        lp["tm_w"], lp["tm_b"] = _init_linear(next(ki), time_emb_dim, dout)
        lp["bn1_g"] = jnp.ones((dout,), jnp.float32)
        lp["bn1_b"] = jnp.zeros((dout,), jnp.float32)
        lp["bn2_g"] = jnp.ones((dout,), jnp.float32)
        lp["bn2_b"] = jnp.zeros((dout,), jnp.float32)
        layers.append(lp)
    params["layers"] = layers
    params["out_w"], params["out_b"] = _init_linear(next(ki), hidden_dims[-1], in_dim)
    return params


def pack_params(params, *, window, n_joints, weight_dtype=MATMUL_DTYPE):
    """Convert-once packing:
       * bake torch's permute(0,2,1).flatten(1) into the fc0 weight row order,
       * zero-pad every matrix/vector to lane multiples,
       * stack ALL weights into one bf16 slab, ALL bias/BN vectors into one f32
         slab, and all layers' time-projection weights into one wide matrix.
       Returns (arrays, spec): arrays are the 3 device slabs, spec is static
       Python metadata (offsets/widths) consumed at trace time."""
    FJ = window * n_joints
    in_dim = 7 * FJ
    time_emb_dim = params["time_w"].shape[0]
    L = len(params["layers"])
    pad_t = _round_up(time_emb_dim, LANES)
    pad_in = _round_up(in_dim, LANES)
    hdims = [params["fc0_w"].shape[1]] + [lp["fc1_w"].shape[1] for lp in params["layers"]]
    pad_h = [_round_up(d, LANES) for d in hdims]
    out_dim = params["out_w"].shape[1]
    p_out = _round_up(out_dim, LANES)

    # ---- weight slab (rows stacked, common width WMAX, all offsets 128-aligned)
    WMAX = max([pad_t, p_out] + pad_h)
    blocks, w_off = [], {}
    cur = 0

    def add_w(name, arr, rows, cols):
        nonlocal cur
        a = _pad2(arr, rows, cols)
        blocks.append(jnp.pad(a, ((0, 0), (0, WMAX - cols))))
        w_off[name] = cur
        cur += rows

    add_w("time", params["time_w"], pad_t, pad_t)

    d0 = hdims[0]
    w0 = jnp.asarray(params["fc0_w"], jnp.float32)
    # Original fc0 row index = c*FJ + fj (c = 0..6).  Re-order so X rows follow
    # X's natural flat index fj*3+c and Q rows follow 3FJ + fj*4+c, matching the
    # wrapper's [X.reshape(B,FJ*3) | Q.reshape(B,FJ*4)] concat.
    wx = w0[:3 * FJ].reshape(3, FJ, d0).transpose(1, 0, 2).reshape(3 * FJ, d0)
    wq = w0[3 * FJ:].reshape(4, FJ, d0).transpose(1, 0, 2).reshape(4 * FJ, d0)
    add_w("xq", jnp.concatenate([wx, wq], axis=0), pad_in, pad_h[0])

    for i, lp in enumerate(params["layers"]):
        add_w(f"w1_{i}", lp["fc1_w"], pad_h[i], pad_h[i + 1])
        add_w(f"w2_{i}", lp["fc2_w"], pad_h[i + 1], pad_h[i + 1])
    add_w("out", params["out_w"], pad_h[L], p_out)
    wslab = jnp.concatenate(blocks, axis=0).astype(weight_dtype)

    # ---- all layers' time projections side by side (one wide matmul)
    t_col_off, tall_w, tall_b = [], [], []
    cur_c = 0
    for i, lp in enumerate(params["layers"]):
        t_col_off.append(cur_c)
        tall_w.append(_pad2(lp["tm_w"], pad_t, pad_h[i + 1]))
        tall_b.append(_pad2(lp["tm_b"], 1, pad_h[i + 1]))
        cur_c += pad_h[i + 1]
    TW = cur_c
    wtall = jnp.concatenate(tall_w, axis=1).astype(weight_dtype)
    bt_all = jnp.concatenate(tall_b, axis=1)          # (1, TW) f32

    # ---- bias / BatchNorm vector slab (one f32 row per vector)
    VW = max(WMAX, TW)
    vrows, v_row = [], {}

    def add_v(name, vec, width):
        v_row[name] = len(vrows)
        vrows.append(jnp.pad(_pad2(vec, 1, width), ((0, 0), (0, VW - width))))

    add_v("btime", params["time_b"], pad_t)
    add_v("b0", params["fc0_b"], pad_h[0])
    add_v("bt_all", bt_all, TW)
    for i, lp in enumerate(params["layers"]):
        d = pad_h[i + 1]
        add_v(f"b1_{i}", lp["fc1_b"], d)
        add_v(f"b2_{i}", lp["fc2_b"], d)
        add_v(f"g1_{i}", lp["bn1_g"], d)
        add_v(f"be1_{i}", lp["bn1_b"], d)
        add_v(f"g2_{i}", lp["bn2_g"], d)
        add_v(f"be2_{i}", lp["bn2_b"], d)
    add_v("bout", params["out_b"], p_out)
    vslab = jnp.concatenate(vrows, axis=0)            # (num_vecs, VW) f32

    arrays = {"wslab": wslab, "wtall": wtall, "vslab": vslab}
    spec = {
        "num_layers": L,
        "time_emb_dim": time_emb_dim,
        "out_dim": out_dim,
        "pad_t": pad_t, "pad_in": pad_in, "p_out": p_out,
        "pad_h": tuple(pad_h),
        "w_off": w_off,
        "t_col_off": tuple(t_col_off),
        "t_width": TW,
        "v_row": v_row,
    }
    return arrays, spec


# --------------------------- plain-JAX reference ----------------------------

def reference_forward(params, X, Q, timestep, *, matmul_dtype=MATMUL_DTYPE):
    """Plain-JAX replica of SimpleMLP.forward (training-mode BatchNorm), using
    the same matmul dtype convention as the kernel for a tight comparison."""
    def dot(a, w):
        return jnp.dot(a.astype(matmul_dtype), w.astype(matmul_dtype),
                       preferred_element_type=jnp.float32)

    def bn(h, g, b, eps=BN_EPS):
        mu = jnp.mean(h, axis=0, keepdims=True)
        var = jnp.mean((h - mu) ** 2, axis=0, keepdims=True)
        return (h - mu) * lax.rsqrt(var + eps) * g + b

    B, frames, joints, _ = X.shape
    FJ = frames * joints
    dim = params["time_w"].shape[0]
    half = dim // 2
    freqs = jnp.exp(jnp.arange(half, dtype=jnp.float32)
                    * -(math.log(10000.0) / (half - 1)))
    ang = timestep.astype(jnp.float32)[:, None] * freqs[None, :]
    temb = jnp.concatenate([jnp.sin(ang), jnp.cos(ang)], axis=-1)
    t = jnp.maximum(dot(temb, params["time_w"]) + params["time_b"], 0.0)

    XQ = jnp.concatenate([X.reshape(B, FJ, 3), Q.reshape(B, FJ, 4)], axis=2)
    XQ = jnp.transpose(XQ, (0, 2, 1)).reshape(B, -1)
    h = dot(XQ.astype(jnp.float32), params["fc0_w"]) + params["fc0_b"]
    for lp in params["layers"]:
        z = bn(jnp.maximum(dot(h, lp["fc1_w"]) + lp["fc1_b"], 0.0),
               lp["bn1_g"], lp["bn1_b"])
        z = z + jnp.maximum(dot(t, lp["tm_w"]) + lp["tm_b"], 0.0)
        h = bn(jnp.maximum(dot(z, lp["fc2_w"]) + lp["fc2_b"], 0.0),
               lp["bn2_g"], lp["bn2_b"])
    out = dot(h, params["out_w"]) + params["out_b"]
    return out.reshape(B, 7, FJ)


# --------------------------------- driver -----------------------------------

if __name__ == "__main__":
    time_emb_dim = 16
    window = 4
    n_joints = 4
    hidden_dims = (32, 32, 32)
    B = 2

    key = jax.random.PRNGKey(0)
    kX, kQ, kT, kP = jax.random.split(key, 4)
    X = jax.random.normal(kX, (B, window, n_joints, 3), jnp.float32)
    Q = jax.random.normal(kQ, (B, window, n_joints, 4), jnp.float32)
    timestep = jax.random.randint(kT, (B,), 0, 1000).astype(jnp.int32)

    params = init_simple_mlp(kP, time_emb_dim, window, n_joints, hidden_dims)
    arrays, spec = pack_params(params, window=window, n_joints=n_joints)

    # spec is static metadata: bind it via partial so jit never traces it.
    fwd = jax.jit(functools.partial(simple_mlp_forward, spec=spec))
    out = jax.block_until_ready(fwd(arrays, X, Q, timestep))
    assert out.shape == (B, 7, window * n_joints), out.shape
    assert bool(jnp.all(jnp.isfinite(out)))

    ref = jax.block_until_ready(reference_forward(params, X, Q, timestep))
    max_err = float(jnp.max(jnp.abs(out - ref)))
    assert max_err < 5e-2, f"mismatch vs reference: max |err| = {max_err}"

    print("KERNEL_OK")
</pallas_src>

<mosaic_0001>
module attributes {stable_mosaic.version = 11 : i64} {
  func.func @_fused_mlp_kernel(%arg0: memref<8x128xbf16, #tpu.memory_space<vmem>>, %arg1: memref<8x128xbf16, #tpu.memory_space<vmem>>, %arg2: memref<896x128xbf16, #tpu.memory_space<vmem>>, %arg3: memref<128x256xbf16, #tpu.memory_space<vmem>>, %arg4: memref<16x256xf32, #tpu.memory_space<vmem>>, %arg5: memref<8x128xf32, #tpu.memory_space<vmem>>) attributes {dimension_semantics = [], scalar_prefetch = 0 : i64, scratch_operands = 0 : i64, tpu.core_type = #tpu.core_type<tc>} {
    %0 = tpu.iota {dimensions = array<i32: 0>} : vector<8x1xi32>
    %c2_i32 = arith.constant 2 : i32
    %1 = vector.broadcast %c2_i32 : i32 to vector<8x1xi32>
    %2 = arith.cmpi slt, %0, %1 : vector<8x1xi32>
    %3 = arith.extui %2 : vector<8x1xi1> to vector<8x1xi32>
    %4 = arith.sitofp %3 : vector<8x1xi32> to vector<8x1xf32>
    %c0 = arith.constant 0 : index
    %c0_0 = arith.constant 0 : index
    %5 = vector.load %arg1[%c0, %c0_0] : memref<8x128xbf16, #tpu.memory_space<vmem>>, vector<8x128xbf16>
    %c0_1 = arith.constant 0 : index
    %c0_2 = arith.constant 0 : index
    %6 = vector.load %arg2[%c0_1, %c0_2] : memref<896x128xbf16, #tpu.memory_space<vmem>>, vector<128x128xbf16>
    %cst = arith.constant dense<0.000000e+00> : vector<8x128xf32>
    %7 = tpu.matmul %5, %6, %cst {dimension_numbers = #tpu.dot_dimension_numbers<[1], [0], [0], [1], [0, 0, 1, 1], [], []>} : vector<8x128xbf16>, vector<128x128xbf16>, vector<8x128xf32> -> vector<8x128xf32>
    %c0_3 = arith.constant 0 : index
    %c0_4 = arith.constant 0 : index
    %8 = vector.load %arg4[%c0_3, %c0_4] : memref<16x256xf32, #tpu.memory_space<vmem>>, vector<1x128xf32>
    %9 = vector.broadcast %8 : vector<1x128xf32> to vector<8x128xf32>
    %10 = arith.addf %7, %9 : vector<8x128xf32>
    %cst_5 = arith.constant 0.000000e+00 : f32
    %11 = vector.broadcast %cst_5 : f32 to vector<8x128xf32>
    %12 = arith.maximumf %10, %11 : vector<8x128xf32>
    %13 = arith.truncf %12 : vector<8x128xf32> to vector<8x128xbf16>
    %c0_6 = arith.constant 0 : index
    %c0_7 = arith.constant 0 : index
    %14 = vector.load %arg3[%c0_6, %c0_7] : memref<128x256xbf16, #tpu.memory_space<vmem>>, vector<128x256xbf16>
    %cst_8 = arith.constant dense<0.000000e+00> : vector<8x256xf32>
    %15 = tpu.matmul %13, %14, %cst_8 {dimension_numbers = #tpu.dot_dimension_numbers<[1], [0], [0], [1], [0, 0, 1, 1], [], []>} : vector<8x128xbf16>, vector<128x256xbf16>, vector<8x256xf32> -> vector<8x256xf32>
    %c2 = arith.constant 2 : index
    %c0_9 = arith.constant 0 : index
    %16 = vector.load %arg4[%c2, %c0_9] : memref<16x256xf32, #tpu.memory_space<vmem>>, vector<1x256xf32>
    %17 = vector.broadcast %16 : vector<1x256xf32> to vector<8x256xf32>
    %18 = arith.addf %15, %17 : vector<8x256xf32>
    %cst_10 = arith.constant 0.000000e+00 : f32
    %19 = vector.broadcast %cst_10 : f32 to vector<8x256xf32>
    %20 = arith.maximumf %18, %19 : vector<8x256xf32>
    %c0_11 = arith.constant 0 : index
    %c0_12 = arith.constant 0 : index
    %21 = vector.load %arg0[%c0_11, %c0_12] : memref<8x128xbf16, #tpu.memory_space<vmem>>, vector<8x128xbf16>
    %c128 = arith.constant 128 : index
    %c0_13 = arith.constant 0 : index
    %22 = vector.load %arg2[%c128, %c0_13] : memref<896x128xbf16, #tpu.memory_space<vmem>>, vector<128x128xbf16>
    %cst_14 = arith.constant dense<0.000000e+00> : vector<8x128xf32>
    %23 = tpu.matmul %21, %22, %cst_14 {dimension_numbers = #tpu.dot_dimension_numbers<[1], [0], [0], [1], [0, 0, 1, 1], [], []>} : vector<8x128xbf16>, vector<128x128xbf16>, vector<8x128xf32> -> vector<8x128xf32>
    %c1 = arith.constant 1 : index
    %c0_15 = arith.constant 0 : index
    %24 = vector.load %arg4[%c1, %c0_15] : memref<16x256xf32, #tpu.memory_space<vmem>>, vector<1x128xf32>
    %25 = vector.broadcast %24 : vector<1x128xf32> to vector<8x128xf32>
    %26 = arith.addf %23, %25 : vector<8x128xf32>
    %27 = arith.truncf %26 : vector<8x128xf32> to vector<8x128xbf16>
    %c256 = arith.constant 256 : index
    %c0_16 = arith.constant 0 : index
    %28 = vector.load %arg2[%c256, %c0_16] : memref<896x128xbf16, #tpu.memory_space<vmem>>, vector<128x128xbf16>
    %cst_17 = arith.constant dense<0.000000e+00> : vector<8x128xf32>
    %29 = tpu.matmul %27, %28, %cst_17 {dimension_numbers = #tpu.dot_dimension_numbers<[1], [0], [0], [1], [0, 0, 1, 1], [], []>} : vector<8x128xbf16>, vector<128x128xbf16>, vector<8x128xf32> -> vector<8x128xf32>
    %c3 = arith.constant 3 : index
    %c0_18 = arith.constant 0 : index
    %30 = vector.load %arg4[%c3, %c0_18] : memref<16x256xf32, #tpu.memory_space<vmem>>, vector<1x128xf32>
    %31 = vector.broadcast %30 : vector<1x128xf32> to vector<8x128xf32>
    %32 = arith.addf %29, %31 : vector<8x128xf32>
    %cst_19 = arith.constant 0.000000e+00 : f32
    %33 = vector.broadcast %cst_19 : f32 to vector<8x128xf32>
    %34 = arith.maximumf %32, %33 : vector<8x128xf32>
    %c5 = arith.constant 5 : index
    %c0_20 = arith.constant 0 : index
    %35 = vector.load %arg4[%c5, %c0_20] : memref<16x256xf32, #tpu.memory_space<vmem>>, vector<1x128xf32>
    %c6 = arith.constant 6 : index
    %c0_21 = arith.constant 0 : index
    %36 = vector.load %arg4[%c6, %c0_21] : memref<16x256xf32, #tpu.memory_space<vmem>>, vector<1x128xf32>
    %37 = vector.broadcast %4 : vector<8x1xf32> to vector<8x128xf32>
    %38 = arith.mulf %34, %37 : vector<8x128xf32>
    %cst_22 = arith.constant dense<0.000000e+00> : vector<128xf32>
    %39 = vector.multi_reduction <add>, %38, %cst_22 [0] : vector<8x128xf32> to vector<128xf32>
    %40 = vector.shape_cast %39 : vector<128xf32> to vector<1x128xf32>
    %cst_23 = arith.constant 5.000000e-01 : f32
    %41 = vector.broadcast %cst_23 : f32 to vector<1x128xf32>
    %42 = arith.mulf %40, %41 : vector<1x128xf32>
    %43 = arith.mulf %38, %38 : vector<8x128xf32>
    %cst_24 = arith.constant dense<0.000000e+00> : vector<128xf32>
    %44 = vector.multi_reduction <add>, %43, %cst_24 [0] : vector<8x128xf32> to vector<128xf32>
    %45 = vector.shape_cast %44 : vector<128xf32> to vector<1x128xf32>
    %cst_25 = arith.constant 5.000000e-01 : f32
    %46 = vector.broadcast %cst_25 : f32 to vector<1x128xf32>
    %47 = arith.mulf %45, %46 : vector<1x128xf32>
    %48 = arith.mulf %42, %42 : vector<1x128xf32>
    %49 = arith.subf %47, %48 : vector<1x128xf32>
    %cst_26 = arith.constant 0.000000e+00 : f32
    %50 = vector.broadcast %cst_26 : f32 to vector<1x128xf32>
    %51 = arith.maximumf %49, %50 : vector<1x128xf32>
    %cst_27 = arith.constant 9.99999974E-6 : f32
    %52 = vector.broadcast %cst_27 : f32 to vector<1x128xf32>
    %53 = arith.addf %51, %52 : vector<1x128xf32>
    %54 = math.rsqrt %53 : vector<1x128xf32>
    %55 = arith.mulf %35, %54 : vector<1x128xf32>
    %56 = arith.mulf %42, %55 : vector<1x128xf32>
    %57 = arith.subf %36, %56 : vector<1x128xf32>
    %58 = vector.broadcast %55 : vector<1x128xf32> to vector<8x128xf32>
    %59 = arith.mulf %34, %58 : vector<8x128xf32>
    %60 = vector.broadcast %57 : vector<1x128xf32> to vector<8x128xf32>
    %61 = arith.addf %59, %60 : vector<8x128xf32>
    %62 = vector.extract_strided_slice %20 {offsets = [0, 0], sizes = [8, 128], strides = [1, 1]} : vector<8x256xf32> to vector<8x128xf32>
    %63 = arith.addf %61, %62 : vector<8x128xf32>
    %64 = arith.truncf %63 : vector<8x128xf32> to vector<8x128xbf16>
    %c384 = arith.constant 384 : index
    %c0_28 = arith.constant 0 : index
    %65 = vector.load %arg2[%c384, %c0_28] : memref<896x128xbf16, #tpu.memory_space<vmem>>, vector<128x128xbf16>
    %cst_29 = arith.constant dense<0.000000e+00> : vector<8x128xf32>
    %66 = tpu.matmul %64, %65, %cst_29 {dimension_numbers = #tpu.dot_dimension_numbers<[1], [0], [0], [1], [0, 0, 1, 1], [], []>} : vector<8x128xbf16>, vector<128x128xbf16>, vector<8x128xf32> -> vector<8x128xf32>
    %c4 = arith.constant 4 : index
    %c0_30 = arith.constant 0 : index
    %67 = vector.load %arg4[%c4, %c0_30] : memref<16x256xf32, #tpu.memory_space<vmem>>, vector<1x128xf32>
    %68 = vector.broadcast %67 : vector<1x128xf32> to vector<8x128xf32>
    %69 = arith.addf %66, %68 : vector<8x128xf32>
    %cst_31 = arith.constant 0.000000e+00 : f32
    %70 = vector.broadcast %cst_31 : f32 to vector<8x128xf32>
    %71 = arith.maximumf %69, %70 : vector<8x128xf32>
    %c7 = arith.constant 7 : index
    %c0_32 = arith.constant 0 : index
    %72 = vector.load %arg4[%c7, %c0_32] : memref<16x256xf32, #tpu.memory_space<vmem>>, vector<1x128xf32>
    %c8 = arith.constant 8 : index
    %c0_33 = arith.constant 0 : index
    %73 = vector.load %arg4[%c8, %c0_33] : memref<16x256xf32, #tpu.memory_space<vmem>>, vector<1x128xf32>
    %74 = vector.broadcast %4 : vector<8x1xf32> to vector<8x128xf32>
    %75 = arith.mulf %71, %74 : vector<8x128xf32>
    %cst_34 = arith.constant dense<0.000000e+00> : vector<128xf32>
    %76 = vector.multi_reduction <add>, %75, %cst_34 [0] : vector<8x128xf32> to vector<128xf32>
    %77 = vector.shape_cast %76 : vector<128xf32> to vector<1x128xf32>
    %cst_35 = arith.constant 5.000000e-01 : f32
    %78 = vector.broadcast %cst_35 : f32 to vector<1x128xf32>
    %79 = arith.mulf %77, %78 : vector<1x128xf32>
    %80 = arith.mulf %75, %75 : vector<8x128xf32>
    %cst_36 = arith.constant dense<0.000000e+00> : vector<128xf32>
    %81 = vector.multi_reduction <add>, %80, %cst_36 [0] : vector<8x128xf32> to vector<128xf32>
    %82 = vector.shape_cast %81 : vector<128xf32> to vector<1x128xf32>
    %cst_37 = arith.constant 5.000000e-01 : f32
    %83 = vector.broadcast %cst_37 : f32 to vector<1x128xf32>
    %84 = arith.mulf %82, %83 : vector<1x128xf32>
    %85 = arith.mulf %79, %79 : vector<1x128xf32>
    %86 = arith.subf %84, %85 : vector<1x128xf32>
    %cst_38 = arith.constant 0.000000e+00 : f32
    %87 = vector.broadcast %cst_38 : f32 to vector<1x128xf32>
    %88 = arith.maximumf %86, %87 : vector<1x128xf32>
    %cst_39 = arith.constant 9.99999974E-6 : f32
    %89 = vector.broadcast %cst_39 : f32 to vector<1x128xf32>
    %90 = arith.addf %88, %89 : vector<1x128xf32>
    %91 = math.rsqrt %90 : vector<1x128xf32>
    %92 = arith.mulf %72, %91 : vector<1x128xf32>
    %93 = arith.mulf %79, %92 : vector<1x128xf32>
    %94 = arith.subf %73, %93 : vector<1x128xf32>
    %95 = vector.broadcast %92 : vector<1x128xf32> to vector<8x128xf32>
    %96 = arith.mulf %71, %95 : vector<8x128xf32>
    %97 = vector.broadcast %94 : vector<1x128xf32> to vector<8x128xf32>
    %98 = arith.addf %96, %97 : vector<8x128xf32>
    %99 = arith.truncf %98 : vector<8x128xf32> to vector<8x128xbf16>
    %c512 = arith.constant 512 : index
    %c0_40 = arith.constant 0 : index
    %100 = vector.load %arg2[%c512, %c0_40] : memref<896x128xbf16, #tpu.memory_space<vmem>>, vector<128x128xbf16>
    %cst_41 = arith.constant dense<0.000000e+00> : vector<8x128xf32>
    %101 = tpu.matmul %99, %100, %cst_41 {dimension_numbers = #tpu.dot_dimension_numbers<[1], [0], [0], [1], [0, 0, 1, 1], [], []>} : vector<8x128xbf16>, vector<128x128xbf16>, vector<8x128xf32> -> vector<8x128xf32>
    %c9 = arith.constant 9 : index
    %c0_42 = arith.constant 0 : index
    %102 = vector.load %arg4[%c9, %c0_42] : memref<16x256xf32, #tpu.memory_space<vmem>>, vector<1x128xf32>
    %103 = vector.broadcast %102 : vector<1x128xf32> to vector<8x128xf32>
    %104 = arith.addf %101, %103 : vector<8x128xf32>
    %cst_43 = arith.constant 0.000000e+00 : f32
    %105 = vector.broadcast %cst_43 : f32 to vector<8x128xf32>
    %106 = arith.maximumf %104, %105 : vector<8x128xf32>
    %c11 = arith.constant 11 : index
    %c0_44 = arith.constant 0 : index
    %107 = vector.load %arg4[%c11, %c0_44] : memref<16x256xf32, #tpu.memory_space<vmem>>, vector<1x128xf32>
    %c12 = arith.constant 12 : index
    %c0_45 = arith.constant 0 : index
    %108 = vector.load %arg4[%c12, %c0_45] : memref<16x256xf32, #tpu.memory_space<vmem>>, vector<1x128xf32>
    %109 = vector.broadcast %4 : vector<8x1xf32> to vector<8x128xf32>
    %110 = arith.mulf %106, %109 : vector<8x128xf32>
    %cst_46 = arith.constant dense<0.000000e+00> : vector<128xf32>
    %111 = vector.multi_reduction <add>, %110, %cst_46 [0] : vector<8x128xf32> to vector<128xf32>
    %112 = vector.shape_cast %111 : vector<128xf32> to vector<1x128xf32>
    %cst_47 = arith.constant 5.000000e-01 : f32
    %113 = vector.broadcast %cst_47 : f32 to vector<1x128xf32>
    %114 = arith.mulf %112, %113 : vector<1x128xf32>
    %115 = arith.mulf %110, %110 : vector<8x128xf32>
    %cst_48 = arith.constant dense<0.000000e+00> : vector<128xf32>
    %116 = vector.multi_reduction <add>, %115, %cst_48 [0] : vector<8x128xf32> to vector<128xf32>
    %117 = vector.shape_cast %116 : vector<128xf32> to vector<1x128xf32>
    %cst_49 = arith.constant 5.000000e-01 : f32
    %118 = vector.broadcast %cst_49 : f32 to vector<1x128xf32>
    %119 = arith.mulf %117, %118 : vector<1x128xf32>
    %120 = arith.mulf %114, %114 : vector<1x128xf32>
    %121 = arith.subf %119, %120 : vector<1x128xf32>
    %cst_50 = arith.constant 0.000000e+00 : f32
    %122 = vector.broadcast %cst_50 : f32 to vector<1x128xf32>
    %123 = arith.maximumf %121, %122 : vector<1x128xf32>
    %cst_51 = arith.constant 9.99999974E-6 : f32
    %124 = vector.broadcast %cst_51 : f32 to vector<1x128xf32>
    %125 = arith.addf %123, %124 : vector<1x128xf32>
    %126 = math.rsqrt %125 : vector<1x128xf32>
    %127 = arith.mulf %107, %126 : vector<1x128xf32>
    %128 = arith.mulf %114, %127 : vector<1x128xf32>
    %129 = arith.subf %108, %128 : vector<1x128xf32>
    %130 = vector.broadcast %127 : vector<1x128xf32> to vector<8x128xf32>
    %131 = arith.mulf %106, %130 : vector<8x128xf32>
    %132 = vector.broadcast %129 : vector<1x128xf32> to vector<8x128xf32>
    %133 = arith.addf %131, %132 : vector<8x128xf32>
    %134 = vector.extract_strided_slice %20 {offsets = [0, 128], sizes = [8, 128], strides = [1, 1]} : vector<8x256xf32> to vector<8x128xf32>
    %135 = arith.addf %133, %134 : vector<8x128xf32>
    %136 = arith.truncf %135 : vector<8x128xf32> to vector<8x128xbf16>
    %c640 = arith.constant 640 : index
    %c0_52 = arith.constant 0 : index
    %137 = vector.load %arg2[%c640, %c0_52] : memref<896x128xbf16, #tpu.memory_space<vmem>>, vector<128x128xbf16>
    %cst_53 = arith.constant dense<0.000000e+00> : vector<8x128xf32>
    %138 = tpu.matmul %136, %137, %cst_53 {dimension_numbers = #tpu.dot_dimension_numbers<[1], [0], [0], [1], [0, 0, 1, 1], [], []>} : vector<8x128xbf16>, vector<128x128xbf16>, vector<8x128xf32> -> vector<8x128xf32>
    %c10 = arith.constant 10 : index
    %c0_54 = arith.constant 0 : index
    %139 = vector.load %arg4[%c10, %c0_54] : memref<16x256xf32, #tpu.memory_space<vmem>>, vector<1x128xf32>
    %140 = vector.broadcast %139 : vector<1x128xf32> to vector<8x128xf32>
    %141 = arith.addf %138, %140 : vector<8x128xf32>
    %cst_55 = arith.constant 0.000000e+00 : f32
    %142 = vector.broadcast %cst_55 : f32 to vector<8x128xf32>
    %143 = arith.maximumf %141, %142 : vector<8x128xf32>
    %c13 = arith.constant 13 : index
    %c0_56 = arith.constant 0 : index
    %144 = vector.load %arg4[%c13, %c0_56] : memref<16x256xf32, #tpu.memory_space<vmem>>, vector<1x128xf32>
    %c14 = arith.constant 14 : index
    %c0_57 = arith.constant 0 : index
    %145 = vector.load %arg4[%c14, %c0_57] : memref<16x256xf32, #tpu.memory_space<vmem>>, vector<1x128xf32>
    %146 = vector.broadcast %4 : vector<8x1xf32> to vector<8x128xf32>
    %147 = arith.mulf %143, %146 : vector<8x128xf32>
    %cst_58 = arith.constant dense<0.000000e+00> : vector<128xf32>
    %148 = vector.multi_reduction <add>, %147, %cst_58 [0] : vector<8x128xf32> to vector<128xf32>
    %149 = vector.shape_cast %148 : vector<128xf32> to vector<1x128xf32>
    %cst_59 = arith.constant 5.000000e-01 : f32
    %150 = vector.broadcast %cst_59 : f32 to vector<1x128xf32>
    %151 = arith.mulf %149, %150 : vector<1x128xf32>
    %152 = arith.mulf %147, %147 : vector<8x128xf32>
    %cst_60 = arith.constant dense<0.000000e+00> : vector<128xf32>
    %153 = vector.multi_reduction <add>, %152, %cst_60 [0] : vector<8x128xf32> to vector<128xf32>
    %154 = vector.shape_cast %153 : vector<128xf32> to vector<1x128xf32>
    %cst_61 = arith.constant 5.000000e-01 : f32
    %155 = vector.broadcast %cst_61 : f32 to vector<1x128xf32>
    %156 = arith.mulf %154, %155 : vector<1x128xf32>
    %157 = arith.mulf %151, %151 : vector<1x128xf32>
    %158 = arith.subf %156, %157 : vector<1x128xf32>
    %cst_62 = arith.constant 0.000000e+00 : f32
    %159 = vector.broadcast %cst_62 : f32 to vector<1x128xf32>
    %160 = arith.maximumf %158, %159 : vector<1x128xf32>
    %cst_63 = arith.constant 9.99999974E-6 : f32
    %161 = vector.broadcast %cst_63 : f32 to vector<1x128xf32>
    %162 = arith.addf %160, %161 : vector<1x128xf32>
    %163 = math.rsqrt %162 : vector<1x128xf32>
    %164 = arith.mulf %144, %163 : vector<1x128xf32>
    %165 = arith.mulf %151, %164 : vector<1x128xf32>
    %166 = arith.subf %145, %165 : vector<1x128xf32>
    %167 = vector.broadcast %164 : vector<1x128xf32> to vector<8x128xf32>
    %168 = arith.mulf %143, %167 : vector<8x128xf32>
    %169 = vector.broadcast %166 : vector<1x128xf32> to vector<8x128xf32>
    %170 = arith.addf %168, %169 : vector<8x128xf32>
    %171 = arith.truncf %170 : vector<8x128xf32> to vector<8x128xbf16>
    %c768 = arith.constant 768 : index
    %c0_64 = arith.constant 0 : index
    %172 = vector.load %arg2[%c768, %c0_64] : memref<896x128xbf16, #tpu.memory_space<vmem>>, vector<128x128xbf16>
    %cst_65 = arith.constant dense<0.000000e+00> : vector<8x128xf32>
    %173 = tpu.matmul %171, %172, %cst_65 {dimension_numbers = #tpu.dot_dimension_numbers<[1], [0], [0], [1], [0, 0, 1, 1], [], []>} : vector<8x128xbf16>, vector<128x128xbf16>, vector<8x128xf32> -> vector<8x128xf32>
    %c15 = arith.constant 15 : index
    %c0_66 = arith.constant 0 : index
    %174 = vector.load %arg4[%c15, %c0_66] : memref<16x256xf32, #tpu.memory_space<vmem>>, vector<1x128xf32>
    %175 = vector.broadcast %174 : vector<1x128xf32> to vector<8x128xf32>
    %176 = arith.addf %173, %175 : vector<8x128xf32>
    %c0_67 = arith.constant 0 : index
    %c0_68 = arith.constant 0 : index
    %177 = vector.load %arg5[%c0_67, %c0_68] : memref<8x128xf32, #tpu.memory_space<vmem>>, vector<8x128xf32>
    tpu.vector_store %arg5[%c0_67, %c0_68], %176 {strides = array<i32>} : memref<8x128xf32, #tpu.memory_space<vmem>>, vector<8x128xf32>,
    return
  }
}

</mosaic_0001>

<llo_original>
// kernel: simple_mlp_forward.1
$region0: #{simple_mlp_forward.1}
  #allocation0 [shape = 'u32[]', space=smem, size = 0x4, offset = 0x4, fixed_abs, tag = 'smem constant byte address 0x4 - core index']
  #allocation1 [shape = 'u32[144,128]{1,0:T(1,128)}', space=vmem, size = 0x12000, scoped, tag = 'internal scratch']
  %s0 = inlined_call_operand.vmem [shape: bf16[8,128], index: 0, kind: input, shape index: {}]
  %s1 = inlined_call_operand.vmem [shape: bf16[8,128], index: 1, kind: input, shape index: {}]
  %s2 = inlined_call_operand.hbm [shape: bf16[896,128], index: 2, kind: input, shape index: {}]
  %s3 = inlined_call_operand.vmem [shape: bf16[128,256], index: 3, kind: input, shape index: {}]
  %s4 = inlined_call_operand.vmem [shape: f32[16,256], index: 4, kind: input, shape index: {}]
  %s5 = inlined_call_operand.vmem [shape: f32[8,128], index: 5, kind: output, shape index: {}]
  %s6 = sld [smem:[#allocation0]]
  $region34: #{simple_mlp_forward.1} parent=0
    _
  %s8 = ssub.s32 1, %s6
  %s9 = scalar_select 0, %s8, %s6
  $region1: #{simple_mlp_forward.1} parent=0
    #allocation2 [shape = 'u8[229376]{0}', space=vmem, size = 0x38000, scoped, tag = 'input window, operand 2, single buffered']
    #allocation3 [shape = 's32[1]{0}', space=sflag, size = 0x4, scoped, tag = 'scoped memory for simple_mlp_forward.1']
    %10 = vsyncpa [#allocation3], 0
    // Predicated region
    $region2: #{simple_mlp_forward.1} parent=1 // pred_check
      _
    $region3: #{simple_mlp_forward.1} parent=1 // pred_check_branch
      %12 = sbr.rel (0) target = $region5
    $region4: #{simple_mlp_forward.1} parent=1 // pred_region
      _
    $region5: #{simple_mlp_forward.1} parent=1 // pred_fallthru
      _
    // Predicated region
    $region6: #{simple_mlp_forward.1} parent=1 // pred_check
      _
    $region7: #{simple_mlp_forward.1} parent=1 // pred_check_branch
      %14 = sbr.rel (0) target = $region9
    $region8: #{simple_mlp_forward.1} parent=1 // pred_region
      _
    $region9: #{simple_mlp_forward.1} parent=1 // pred_fallthru
      _
    // Predicated region
    $region10: #{simple_mlp_forward.1} parent=1 // pred_check
      _
    $region11: #{simple_mlp_forward.1} parent=1 // pred_check_branch
      %16 = sbr.rel (0) target = $region13
    $region12: #{simple_mlp_forward.1} parent=1 // pred_region
      %s18 = ssub.s32 7168, 7168
      %19 = vsyncadd [#allocation3], %s18
      %s20 = sshll.u32 [#allocation2], 4
      %s21 = int_to_ptr.vmem [resolvable:$true] %s20
      %26 = dma.hbm_to_vmem [thread:$0]  %s2, 7168, %s21, [#allocation3], 64, 64, 4
    $region13: #{simple_mlp_forward.1} parent=1 // pred_fallthru
      _
    // Predicated region
    $region14: #{simple_mlp_forward.1} parent=1 // pred_check
      _
    $region15: #{simple_mlp_forward.1} parent=1 // pred_check_branch
      %28 = sbr.rel (0) target = $region17
    $region16: #{simple_mlp_forward.1} parent=1 // pred_region
      _
    $region17: #{simple_mlp_forward.1} parent=1 // pred_fallthru
      _
    // Predicated region
    $region18: #{simple_mlp_forward.1} parent=1 // pred_check
      _
    $region19: #{simple_mlp_forward.1} parent=1 // pred_check_branch
      %30 = sbr.rel (0) target = $region21
    $region20: #{simple_mlp_forward.1} parent=1 // pred_region
      _
    $region21: #{simple_mlp_forward.1} parent=1 // pred_fallthru
      _
    // Predicated region
    $region22: #{simple_mlp_forward.1} parent=1 // pred_check
      _
    $region23: #{simple_mlp_forward.1} parent=1 // pred_check_branch
      %32 = sbr.rel (0) target = $region25
    $region24: #{simple_mlp_forward.1} parent=1 // pred_region
      %33 = dma.done [#allocation3], 7168
    $region25: #{simple_mlp_forward.1} parent=1 // pred_fallthru
      _
    %v35 = vlaneseq
    %v36 = vshrl.u32 %v35, 7
    %vm37 = vcmp.lt.s32.totalorder %v36, 2
    %v38 = vsel %vm37, 1, 0
    %v39 = vcvt.s32.f32 %v38
    %v40 = vld [vmem:[%s1] sm:$0xf]
    %v41 = vld [vmem:[#allocation2] sm:$0xf]
    %v42 = vld [vmem:[#allocation2 + $0x4] sm:$0xf]
    %v43 = vld [vmem:[#allocation2 + $0x8] sm:$0xf]
    %v44 = vld [vmem:[#allocation2 + $0xc] sm:$0xf]
    %v45 = vld [vmem:[#allocation2 + $0x10] sm:$0xf]
    %v46 = vld [vmem:[#allocation2 + $0x14] sm:$0xf]
    %v47 = vld [vmem:[#allocation2 + $0x18] sm:$0xf]
    %v48 = vld [vmem:[#allocation2 + $0x1c] sm:$0xf]
    %v49 = vld [vmem:[#allocation2 + $0x20] sm:$0xf]
    %v50 = vld [vmem:[#allocation2 + $0x24] sm:$0xf]
    %v51 = vld [vmem:[#allocation2 + $0x28] sm:$0xf]
    %v52 = vld [vmem:[#allocation2 + $0x2c] sm:$0xf]
    %v53 = vld [vmem:[#allocation2 + $0x30] sm:$0xf]
    %v54 = vld [vmem:[#allocation2 + $0x34] sm:$0xf]
    %v55 = vld [vmem:[#allocation2 + $0x38] sm:$0xf]
    %v56 = vld [vmem:[#allocation2 + $0x3c] sm:$0xf]
    %v57 = vld [vmem:[%s4] ss:$0 sm:$0xff]
    %v74 = vunpack.c.l.b16 %v41
    %v75 = vunpack.c.l.b16 %v42
    %v76 = vunpack.c.l.b16 %v43
    %v77 = vunpack.c.l.b16 %v44
    %v78 = vunpack.c.l.b16 %v45
    %v79 = vunpack.c.l.b16 %v46
    %v80 = vunpack.c.l.b16 %v47
    %v81 = vunpack.c.l.b16 %v48
    %v82 = vunpack.c.l.b16 %v49
    %v83 = vunpack.c.l.b16 %v50
    %v84 = vunpack.c.l.b16 %v51
    %v85 = vunpack.c.l.b16 %v52
    %v86 = vunpack.c.l.b16 %v53
    %v87 = vunpack.c.l.b16 %v54
    %v88 = vunpack.c.l.b16 %v55
    %v89 = vunpack.c.l.b16 %v56
    %v90 = vpack.c.b16 %v75, %v74
    %v91 = vpack.c.b16 %v77, %v76
    %v92 = vpack.c.b16 %v79, %v78
    %v93 = vpack.c.b16 %v81, %v80
    %v94 = vpack.c.b16 %v83, %v82
    %v95 = vpack.c.b16 %v85, %v84
    %v96 = vpack.c.b16 %v87, %v86
    %v97 = vpack.c.b16 %v89, %v88
    %106 = vmatprep.subr.bf16.mxu0 0
    %107 = vmatpush1.bf16.msra.mxu0 %v90
    %108 = vmatprep.subr.bf16.mxu0 0
    %109 = vmatpush1.bf16.msra.mxu0 %v91
    %110 = vmatprep.subr.bf16.mxu0 0
    %111 = vmatpush1.bf16.msra.mxu0 %v92
    %112 = vmatprep.subr.bf16.mxu0 0
    %113 = vmatpush1.bf16.msra.mxu0 %v93
    %114 = vmatprep.subr.bf16.mxu0 0
    %115 = vmatpush1.bf16.msra.mxu0 %v94
    %116 = vmatprep.subr.bf16.mxu0 0
    %117 = vmatpush1.bf16.msra.mxu0 %v95
    %118 = vmatprep.subr.bf16.mxu0 0
    %119 = vmatpush1.bf16.msra.mxu0 %v96
    %120 = vmatprep.subr.bf16.mxu0 0
    %121 = vmatpush1.bf16.msra.mxu0 %v97
    %122 = vmatprep.subr.bf16.mxu0 0
    %123 = vmatpush1.bf16.msra.mxu0 0
    %124 = vmatprep.subr.bf16.mxu0 0
    %125 = vmatpush1.bf16.msra.mxu0 0
    %126 = vmatprep.subr.bf16.mxu0 0
    %127 = vmatpush1.bf16.msra.mxu0 0
    %128 = vmatprep.subr.bf16.mxu0 0
    %129 = vmatpush1.bf16.msra.mxu0 0
    %130 = vmatprep.subr.bf16.mxu0 0
    %131 = vmatpush1.bf16.msra.mxu0 0
    %132 = vmatprep.subr.bf16.mxu0 0
    %133 = vmatpush1.bf16.msra.mxu0 0
    %134 = vmatprep.subr.bf16.mxu0 0
    %135 = vmatpush1.bf16.msra.mxu0 0
    %136 = vmatprep.subr.bf16.mxu0 0
    %137 = vmatpush1.bf16.msra.mxu0 0
    %138 = vmatprep.mubr.bf16.mxu0 0
    %139 = vmatmul.mubr.bf16.gmra.mrb[0].mxu0 %v40
    %v140 = vpop.f32.mrb[0].mxu0
    %v141 = vadd.f32 %v57, %v140
    %v142 = vpop.f32.mrb[0].mxu0
    %v143 = vpop.f32.mrb[0].mxu0
    %v144 = vpop.f32.mrb[0].mxu0
    %145 = vdwg.mxu0
    %v146 = vmax.f32 %v141, 0.0
    %v147 = vpack.c.bf16 %v146, %v146
    %v148 = vld [vmem:[%s3] sm:$0xff]
    %v149 = vld [vmem:[%s3 + $0x8] sm:$0xff]
    %v150 = vld [vmem:[%s3 + $0x10] sm:$0xff]
    %v151 = vld [vmem:[%s3 + $0x18] sm:$0xff]
    %v152 = vld [vmem:[%s3 + $0x20] sm:$0xff]
    %v153 = vld [vmem:[%s3 + $0x28] sm:$0xff]
    %v154 = vld [vmem:[%s3 + $0x30] sm:$0xff]
    %v155 = vld [vmem:[%s3 + $0x38] sm:$0xff]
    %v156 = vld [vmem:[%s3 + $0x40] sm:$0xff]
    %v157 = vld [vmem:[%s3 + $0x48] sm:$0xff]
    %v158 = vld [vmem:[%s3 + $0x50] sm:$0xff]
    %v159 = vld [vmem:[%s3 + $0x58] sm:$0xff]
    %v160 = vld [vmem:[%s3 + $0x60] sm:$0xff]
    %v161 = vld [vmem:[%s3 + $0x68] sm:$0xff]
    %v162 = vld [vmem:[%s3 + $0x70] sm:$0xff]
    %v163 = vld [vmem:[%s3 + $0x78] sm:$0xff]
    %s164 = scalar_lea.vmem %s4, 2
    %v165 = vld [vmem:[%s164] ss:$8 sm:$0x3]
    %v167 = vlaneseq
    %v168 = vshrl.u32 %v167, 7
    %v169 = vsub.s32 0, %v168
    %v170 = vrot.slane %v165, %v169
    %v171 = vlaneseq
    %v172 = vshrl.u32 %v171, 7
    %v173 = vsub.s32 1, %v172
    %v174 = vrot.slane %v165, %v173
    %v193 = vunpack.c.l.b16 %v148
    %v194 = vunpack.c.h.b16 %v148
    %v195 = vunpack.c.l.b16 %v149
    %v196 = vunpack.c.h.b16 %v149
    %v197 = vunpack.c.l.b16 %v150
    %v198 = vunpack.c.h.b16 %v150
    %v199 = vunpack.c.l.b16 %v151
    %v200 = vunpack.c.h.b16 %v151
    %v201 = vunpack.c.l.b16 %v152
    %v202 = vunpack.c.h.b16 %v152
    %v203 = vunpack.c.l.b16 %v153
    %v204 = vunpack.c.h.b16 %v153
    %v205 = vunpack.c.l.b16 %v154
    %v206 = vunpack.c.h.b16 %v154
    %v207 = vunpack.c.l.b16 %v155
    %v208 = vunpack.c.h.b16 %v155
    %v209 = vunpack.c.l.b16 %v156
    %v210 = vunpack.c.h.b16 %v156
    %v211 = vunpack.c.l.b16 %v157
    %v212 = vunpack.c.h.b16 %v157
    %v213 = vunpack.c.l.b16 %v158
    %v214 = vunpack.c.h.b16 %v158
    %v215 = vunpack.c.l.b16 %v159
    %v216 = vunpack.c.h.b16 %v159
    %v217 = vunpack.c.l.b16 %v160
    %v218 = vunpack.c.h.b16 %v160
    %v219 = vunpack.c.l.b16 %v161
    %v220 = vunpack.c.h.b16 %v161
    %v221 = vunpack.c.l.b16 %v162
    %v222 = vunpack.c.h.b16 %v162
    %v223 = vunpack.c.l.b16 %v163
    %v224 = vunpack.c.h.b16 %v163
    %v225 = vpack.c.b16 %v195, %v193
    %v226 = vpack.c.b16 %v196, %v194
    %v227 = vpack.c.b16 %v199, %v197
    %v228 = vpack.c.b16 %v200, %v198
    %v229 = vpack.c.b16 %v203, %v201
    %v230 = vpack.c.b16 %v204, %v202
    %v231 = vpack.c.b16 %v207, %v205
    %v232 = vpack.c.b16 %v208, %v206
    %v233 = vpack.c.b16 %v211, %v209
    %v234 = vpack.c.b16 %v212, %v210
    %v235 = vpack.c.b16 %v215, %v213
    %v236 = vpack.c.b16 %v216, %v214
    %v237 = vpack.c.b16 %v219, %v217
    %v238 = vpack.c.b16 %v220, %v218
    %v239 = vpack.c.b16 %v223, %v221
    %v240 = vpack.c.b16 %v224, %v222
    %257 = vmatprep.subr.bf16.mxu0 %v226
    %258 = vmatpush1.bf16.msra.mxu0 %v225
    %259 = vmatprep.subr.bf16.mxu0 %v228
    %260 = vmatpush1.bf16.msra.mxu0 %v227
    %261 = vmatprep.subr.bf16.mxu0 %v230
    %262 = vmatpush1.bf16.msra.mxu0 %v229
    %263 = vmatprep.subr.bf16.mxu0 %v232
    %264 = vmatpush1.bf16.msra.mxu0 %v231
    %265 = vmatprep.subr.bf16.mxu0 %v234
    %266 = vmatpush1.bf16.msra.mxu0 %v233
    %267 = vmatprep.subr.bf16.mxu0 %v236
    %268 = vmatpush1.bf16.msra.mxu0 %v235
    %269 = vmatprep.subr.bf16.mxu0 %v238
    %270 = vmatpush1.bf16.msra.mxu0 %v237
    %271 = vmatprep.subr.bf16.mxu0 %v240
    %272 = vmatpush1.bf16.msra.mxu0 %v239
    %273 = vmatprep.subr.bf16.mxu0 0
    %274 = vmatpush1.bf16.msra.mxu0 0
    %275 = vmatprep.subr.bf16.mxu0 0
    %276 = vmatpush1.bf16.msra.mxu0 0
    %277 = vmatprep.subr.bf16.mxu0 0
    %278 = vmatpush1.bf16.msra.mxu0 0
    %279 = vmatprep.subr.bf16.mxu0 0
    %280 = vmatpush1.bf16.msra.mxu0 0
    %281 = vmatprep.subr.bf16.mxu0 0
    %282 = vmatpush1.bf16.msra.mxu0 0
    %283 = vmatprep.subr.bf16.mxu0 0
    %284 = vmatpush1.bf16.msra.mxu0 0
    %285 = vmatprep.subr.bf16.mxu0 0
    %286 = vmatpush1.bf16.msra.mxu0 0
    %287 = vmatprep.subr.bf16.mxu0 0
    %288 = vmatpush1.bf16.msra.mxu0 0
    %289 = vmatprep.mubr.bf16.mxu0 0
    %290 = vmatmul.mubr.bf16.gmra.mrb[0].mxu0 %v147
    %v291 = vpop.f32.mrb[0].mxu0
    %v292 = vadd.f32 %v170, %v291
    %v293 = vpop.f32.mrb[0].mxu0
    %v294 = vadd.f32 %v174, %v293
    %v295 = vpop.f32.mrb[0].mxu0
    %v296 = vpop.f32.mrb[0].mxu0
    %297 = vdwg.mxu0
    %v298 = vmax.f32 %v292, 0.0
    %v299 = vmax.f32 %v294, 0.0
    %v300 = vld [vmem:[%s0] sm:$0xf]
    %v301 = vld [vmem:[#allocation2 + $0x40] sm:$0xf]
    %v302 = vld [vmem:[#allocation2 + $0x44] sm:$0xf]
    %v303 = vld [vmem:[#allocation2 + $0x48] sm:$0xf]
    %v304 = vld [vmem:[#allocation2 + $0x4c] sm:$0xf]
    %v305 = vld [vmem:[#allocation2 + $0x50] sm:$0xf]
    %v306 = vld [vmem:[#allocation2 + $0x54] sm:$0xf]
    %v307 = vld [vmem:[#allocation2 + $0x58] sm:$0xf]
    %v308 = vld [vmem:[#allocation2 + $0x5c] sm:$0xf]
    %v309 = vld [vmem:[#allocation2 + $0x60] sm:$0xf]
    %v310 = vld [vmem:[#allocation2 + $0x64] sm:$0xf]
    %v311 = vld [vmem:[#allocation2 + $0x68] sm:$0xf]
    %v312 = vld [vmem:[#allocation2 + $0x6c] sm:$0xf]
    %v313 = vld [vmem:[#allocation2 + $0x70] sm:$0xf]
    %v314 = vld [vmem:[#allocation2 + $0x74] sm:$0xf]
    %v315 = vld [vmem:[#allocation2 + $0x78] sm:$0xf]
    %v316 = vld [vmem:[#allocation2 + $0x7c] sm:$0xf]
    %v317 = vld [vmem:[%s4 + $0x1] ss:$0 sm:$0xff]
    %v334 = vunpack.c.l.b16 %v301
    %v335 = vunpack.c.l.b16 %v302
    %v336 = vunpack.c.l.b16 %v303
    %v337 = vunpack.c.l.b16 %v304
    %v338 = vunpack.c.l.b16 %v305
    %v339 = vunpack.c.l.b16 %v306
    %v340 = vunpack.c.l.b16 %v307
    %v341 = vunpack.c.l.b16 %v308
    %v342 = vunpack.c.l.b16 %v309
    %v343 = vunpack.c.l.b16 %v310
    %v344 = vunpack.c.l.b16 %v311
    %v345 = vunpack.c.l.b16 %v312
    %v346 = vunpack.c.l.b16 %v313
    %v347 = vunpack.c.l.b16 %v314
    %v348 = vunpack.c.l.b16 %v315
    %v349 = vunpack.c.l.b16 %v316
    %v350 = vpack.c.b16 %v335, %v334
    %v351 = vpack.c.b16 %v337, %v336
    %v352 = vpack.c.b16 %v339, %v338
    %v353 = vpack.c.b16 %v341, %v340
    %v354 = vpack.c.b16 %v343, %v342
    %v355 = vpack.c.b16 %v345, %v344
    %v356 = vpack.c.b16 %v347, %v346
    %v357 = vpack.c.b16 %v349, %v348
    %366 = vmatprep.subr.bf16.mxu0 0
    %367 = vmatpush1.bf16.msra.mxu0 %v350
    %368 = vmatprep.subr.bf16.mxu0 0
    %369 = vmatpush1.bf16.msra.mxu0 %v351
    %370 = vmatprep.subr.bf16.mxu0 0
    %371 = vmatpush1.bf16.msra.mxu0 %v352
    %372 = vmatprep.subr.bf16.mxu0 0
    %373 = vmatpush1.bf16.msra.mxu0 %v353
    %374 = vmatprep.subr.bf16.mxu0 0
    %375 = vmatpush1.bf16.msra.mxu0 %v354
    %376 = vmatprep.subr.bf16.mxu0 0
    %377 = vmatpush1.bf16.msra.mxu0 %v355
    %378 = vmatprep.subr.bf16.mxu0 0
    %379 = vmatpush1.bf16.msra.mxu0 %v356
    %380 = vmatprep.subr.bf16.mxu0 0
    %381 = vmatpush1.bf16.msra.mxu0 %v357
    %382 = vmatprep.subr.bf16.mxu0 0
    %383 = vmatpush1.bf16.msra.mxu0 0
    %384 = vmatprep.subr.bf16.mxu0 0
    %385 = vmatpush1.bf16.msra.mxu0 0
    %386 = vmatprep.subr.bf16.mxu0 0
    %387 = vmatpush1.bf16.msra.mxu0 0
    %388 = vmatprep.subr.bf16.mxu0 0
    %389 = vmatpush1.bf16.msra.mxu0 0
    %390 = vmatprep.subr.bf16.mxu0 0
    %391 = vmatpush1.bf16.msra.mxu0 0
    %392 = vmatprep.subr.bf16.mxu0 0
    %393 = vmatpush1.bf16.msra.mxu0 0
    %394 = vmatprep.subr.bf16.mxu0 0
    %395 = vmatpush1.bf16.msra.mxu0 0
    %396 = vmatprep.subr.bf16.mxu0 0
    %397 = vmatpush1.bf16.msra.mxu0 0
    %398 = vmatprep.mubr.bf16.mxu0 0
    %399 = vmatmul.mubr.bf16.gmra.mrb[0].mxu0 %v300
    %v400 = vpop.f32.mrb[0].mxu0
    %v401 = vadd.f32 %v317, %v400
    %v402 = vpop.f32.mrb[0].mxu0
    %v403 = vpop.f32.mrb[0].mxu0
    %v404 = vpop.f32.mrb[0].mxu0
    %405 = vdwg.mxu0
    %v406 = vpack.c.bf16 %v401, %v401
    %v407 = vld [vmem:[#allocation2 + $0x80] sm:$0xf]
    %v408 = vld [vmem:[#allocation2 + $0x84] sm:$0xf]
    %v409 = vld [vmem:[#allocation2 + $0x88] sm:$0xf]
    %v410 = vld [vmem:[#allocation2 + $0x8c] sm:$0xf]
    %v411 = vld [vmem:[#allocation2 + $0x90] sm:$0xf]
    %v412 = vld [vmem:[#allocation2 + $0x94] sm:$0xf]
    %v413 = vld [vmem:[#allocation2 + $0x98] sm:$0xf]
    %v414 = vld [vmem:[#allocation2 + $0x9c] sm:$0xf]
    %v415 = vld [vmem:[#allocation2 + $0xa0] sm:$0xf]
    %v416 = vld [vmem:[#allocation2 + $0xa4] sm:$0xf]
    %v417 = vld [vmem:[#allocation2 + $0xa8] sm:$0xf]
    %v418 = vld [vmem:[#allocation2 + $0xac] sm:$0xf]
    %v419 = vld [vmem:[#allocation2 + $0xb0] sm:$0xf]
    %v420 = vld [vmem:[#allocation2 + $0xb4] sm:$0xf]
    %v421 = vld [vmem:[#allocation2 + $0xb8] sm:$0xf]
    %v422 = vld [vmem:[#allocation2 + $0xbc] sm:$0xf]
    %v423 = vld [vmem:[%s4 + $0x3] ss:$0 sm:$0xff]
    %v440 = vunpack.c.l.b16 %v407
    %v441 = vunpack.c.l.b16 %v408
    %v442 = vunpack.c.l.b16 %v409
    %v443 = vunpack.c.l.b16 %v410
    %v444 = vunpack.c.l.b16 %v411
    %v445 = vunpack.c.l.b16 %v412
    %v446 = vunpack.c.l.b16 %v413
    %v447 = vunpack.c.l.b16 %v414
    %v448 = vunpack.c.l.b16 %v415
    %v449 = vunpack.c.l.b16 %v416
    %v450 = vunpack.c.l.b16 %v417
    %v451 = vunpack.c.l.b16 %v418
    %v452 = vunpack.c.l.b16 %v419
    %v453 = vunpack.c.l.b16 %v420
    %v454 = vunpack.c.l.b16 %v421
    %v455 = vunpack.c.l.b16 %v422
    %v456 = vpack.c.b16 %v441, %v440
    %v457 = vpack.c.b16 %v443, %v442
    %v458 = vpack.c.b16 %v445, %v444
    %v459 = vpack.c.b16 %v447, %v446
    %v460 = vpack.c.b16 %v449, %v448
    %v461 = vpack.c.b16 %v451, %v450
    %v462 = vpack.c.b16 %v453, %v452
    %v463 = vpack.c.b16 %v455, %v454
    %472 = vmatprep.subr.bf16.mxu0 0
    %473 = vmatpush1.bf16.msra.mxu0 %v456
    %474 = vmatprep.subr.bf16.mxu0 0
    %475 = vmatpush1.bf16.msra.mxu0 %v457
    %476 = vmatprep.subr.bf16.mxu0 0
    %477 = vmatpush1.bf16.msra.mxu0 %v458
    %478 = vmatprep.subr.bf16.mxu0 0
    %479 = vmatpush1.bf16.msra.mxu0 %v459
    %480 = vmatprep.subr.bf16.mxu0 0
    %481 = vmatpush1.bf16.msra.mxu0 %v460
    %482 = vmatprep.subr.bf16.mxu0 0
    %483 = vmatpush1.bf16.msra.mxu0 %v461
    %484 = vmatprep.subr.bf16.mxu0 0
    %485 = vmatpush1.bf16.msra.mxu0 %v462
    %486 = vmatprep.subr.bf16.mxu0 0
    %487 = vmatpush1.bf16.msra.mxu0 %v463
    %488 = vmatprep.subr.bf16.mxu0 0
    %489 = vmatpush1.bf16.msra.mxu0 0
    %490 = vmatprep.subr.bf16.mxu0 0
    %491 = vmatpush1.bf16.msra.mxu0 0
    %492 = vmatprep.subr.bf16.mxu0 0
    %493 = vmatpush1.bf16.msra.mxu0 0
    %494 = vmatprep.subr.bf16.mxu0 0
    %495 = vmatpush1.bf16.msra.mxu0 0
    %496 = vmatprep.subr.bf16.mxu0 0
    %497 = vmatpush1.bf16.msra.mxu0 0
    %498 = vmatprep.subr.bf16.mxu0 0
    %499 = vmatpush1.bf16.msra.mxu0 0
    %500 = vmatprep.subr.bf16.mxu0 0
    %501 = vmatpush1.bf16.msra.mxu0 0
    %502 = vmatprep.subr.bf16.mxu0 0
    %503 = vmatpush1.bf16.msra.mxu0 0
    %504 = vmatprep.mubr.bf16.mxu0 0
    %505 = vmatmul.mubr.bf16.gmra.mrb[0].mxu0 %v406
    %v506 = vpop.f32.mrb[0].mxu0
    %v507 = vadd.f32 %v423, %v506
    %v508 = vpop.f32.mrb[0].mxu0
    %v509 = vpop.f32.mrb[0].mxu0
    %v510 = vpop.f32.mrb[0].mxu0
    %511 = vdwg.mxu0
    %v512 = vmax.f32 %v507, 0.0
    %v513 = vld [vmem:[%s4 + $0x5] ss:$0 sm:$0xff]
    %v514 = vld [vmem:[%s4 + $0x6] ss:$0 sm:$0xff]
    %v515 = vmul.f32 %v512, %v39
    %v516 = vrot.slane %v515, 4
    %v517 = vadd.f32 %v515, %v516
    %v518 = vrot.slane %v517, 2
    %v519 = vadd.f32 %v517, %v518
    %v520 = vrot.slane %v519, 1
    %v521 = vadd.f32 %v519, %v520
    %v522 = vmul.f32 %v521, 0.5
    %v523 = vmul.f32 %v515, %v515
    %v524 = vrot.slane %v523, 4
    %v525 = vadd.f32 %v523, %v524
    %v526 = vrot.slane %v525, 2
    %v527 = vadd.f32 %v525, %v526
    %v528 = vrot.slane %v527, 1
    %v529 = vadd.f32 %v527, %v528
    %v530 = vmul.f32 %v529, 0.5
    %v531 = vmul.f32 %v522, %v522
    %v532 = vsub.f32 %v530, %v531
    %v533 = vmax.f32 %v532, 0.0
    %v534 = vadd.f32 %v533, 1e-05
    %v535 = vrsqrt.pop %v534
    %v536 = vmul.f32 %v513, %v535
    %v537 = vmul.f32 %v522, %v536
    %v538 = vsub.f32 %v514, %v537
    %v539 = vmul.f32 %v512, %v536
    %v540 = vadd.f32 %v539, %v538
    %v541 = vadd.f32 %v540, %v298
    %v542 = vpack.c.bf16 %v541, %v541
    %v543 = vld [vmem:[#allocation2 + $0xc0] sm:$0xf]
    %v544 = vld [vmem:[#allocation2 + $0xc4] sm:$0xf]
    %v545 = vld [vmem:[#allocation2 + $0xc8] sm:$0xf]
    %v546 = vld [vmem:[#allocation2 + $0xcc] sm:$0xf]
    %v547 = vld [vmem:[#allocation2 + $0xd0] sm:$0xf]
    %v548 = vld [vmem:[#allocation2 + $0xd4] sm:$0xf]
    %v549 = vld [vmem:[#allocation2 + $0xd8] sm:$0xf]
    %v550 = vld [vmem:[#allocation2 + $0xdc] sm:$0xf]
    %v551 = vld [vmem:[#allocation2 + $0xe0] sm:$0xf]
    %v552 = vld [vmem:[#allocation2 + $0xe4] sm:$0xf]
    %v553 = vld [vmem:[#allocation2 + $0xe8] sm:$0xf]
    %v554 = vld [vmem:[#allocation2 + $0xec] sm:$0xf]
    %v555 = vld [vmem:[#allocation2 + $0xf0] sm:$0xf]
    %v556 = vld [vmem:[#allocation2 + $0xf4] sm:$0xf]
    %v557 = vld [vmem:[#allocation2 + $0xf8] sm:$0xf]
    %v558 = vld [vmem:[#allocation2 + $0xfc] sm:$0xf]
    %v559 = vld [vmem:[%s4 + $0x4] ss:$0 sm:$0xff]
    %v576 = vunpack.c.l.b16 %v543
    %v577 = vunpack.c.l.b16 %v544
    %v578 = vunpack.c.l.b16 %v545
    %v579 = vunpack.c.l.b16 %v546
    %v580 = vunpack.c.l.b16 %v547
    %v581 = vunpack.c.l.b16 %v548
    %v582 = vunpack.c.l.b16 %v549
    %v583 = vunpack.c.l.b16 %v550
    %v584 = vunpack.c.l.b16 %v551
    %v585 = vunpack.c.l.b16 %v552
    %v586 = vunpack.c.l.b16 %v553
    %v587 = vunpack.c.l.b16 %v554
    %v588 = vunpack.c.l.b16 %v555
    %v589 = vunpack.c.l.b16 %v556
    %v590 = vunpack.c.l.b16 %v557
    %v591 = vunpack.c.l.b16 %v558
    %v592 = vpack.c.b16 %v577, %v576
    %v593 = vpack.c.b16 %v579, %v578
    %v594 = vpack.c.b16 %v581, %v580
    %v595 = vpack.c.b16 %v583, %v582
    %v596 = vpack.c.b16 %v585, %v584
    %v597 = vpack.c.b16 %v587, %v586
    %v598 = vpack.c.b16 %v589, %v588
    %v599 = vpack.c.b16 %v591, %v590
    %608 = vmatprep.subr.bf16.mxu0 0
    %609 = vmatpush1.bf16.msra.mxu0 %v592
    %610 = vmatprep.subr.bf16.mxu0 0
    %611 = vmatpush1.bf16.msra.mxu0 %v593
    %612 = vmatprep.subr.bf16.mxu0 0
    %613 = vmatpush1.bf16.msra.mxu0 %v594
    %614 = vmatprep.subr.bf16.mxu0 0
    %615 = vmatpush1.bf16.msra.mxu0 %v595
    %616 = vmatprep.subr.bf16.mxu0 0
    %617 = vmatpush1.bf16.msra.mxu0 %v596
    %618 = vmatprep.subr.bf16.mxu0 0
    %619 = vmatpush1.bf16.msra.mxu0 %v597
    %620 = vmatprep.subr.bf16.mxu0 0
    %621 = vmatpush1.bf16.msra.mxu0 %v598
    %622 = vmatprep.subr.bf16.mxu0 0
    %623 = vmatpush1.bf16.msra.mxu0 %v599
    %624 = vmatprep.subr.bf16.mxu0 0
    %625 = vmatpush1.bf16.msra.mxu0 0
    %626 = vmatprep.subr.bf16.mxu0 0
    %627 = vmatpush1.bf16.msra.mxu0 0
    %628 = vmatprep.subr.bf16.mxu0 0
    %629 = vmatpush1.bf16.msra.mxu0 0
    %630 = vmatprep.subr.bf16.mxu0 0
    %631 = vmatpush1.bf16.msra.mxu0 0
    %632 = vmatprep.subr.bf16.mxu0 0
    %633 = vmatpush1.bf16.msra.mxu0 0
    %634 = vmatprep.subr.bf16.mxu0 0
    %635 = vmatpush1.bf16.msra.mxu0 0
    %636 = vmatprep.subr.bf16.mxu0 0
    %637 = vmatpush1.bf16.msra.mxu0 0
    %638 = vmatprep.subr.bf16.mxu0 0
    %639 = vmatpush1.bf16.msra.mxu0 0
    %640 = vmatprep.mubr.bf16.mxu0 0
    %641 = vmatmul.mubr.bf16.gmra.mrb[0].mxu0 %v542
    %v642 = vpop.f32.mrb[0].mxu0
    %v643 = vadd.f32 %v559, %v642
    %v644 = vpop.f32.mrb[0].mxu0
    %v645 = vpop.f32.mrb[0].mxu0
    %v646 = vpop.f32.mrb[0].mxu0
    %647 = vdwg.mxu0
    %v648 = vmax.f32 %v643, 0.0
    %v649 = vld [vmem:[%s4 + $0x7] ss:$0 sm:$0xff]
    %v650 = vld [vmem:[%s4 + $0x10] ss:$0 sm:$0xff]
    %v651 = vmul.f32 %v648, %v39
    %v652 = vrot.slane %v651, 4
    %v653 = vadd.f32 %v651, %v652
    %v654 = vrot.slane %v653, 2
    %v655 = vadd.f32 %v653, %v654
    %v656 = vrot.slane %v655, 1
    %v657 = vadd.f32 %v655, %v656
    %v658 = vmul.f32 %v657, 0.5
    %v659 = vmul.f32 %v651, %v651
    %v660 = vrot.slane %v659, 4
    %v661 = vadd.f32 %v659, %v660
    %v662 = vrot.slane %v661, 2
    %v663 = vadd.f32 %v661, %v662
    %v664 = vrot.slane %v663, 1
    %v665 = vadd.f32 %v663, %v664
    %v666 = vmul.f32 %v665, 0.5
    %v667 = vmul.f32 %v658, %v658
    %v668 = vsub.f32 %v666, %v667
    %v669 = vmax.f32 %v668, 0.0
    %v670 = vadd.f32 %v669, 1e-05
    %v671 = vrsqrt.pop %v670
    %v672 = vmul.f32 %v649, %v671
    %v673 = vmul.f32 %v658, %v672
    %v674 = vsub.f32 %v650, %v673
    %v675 = vmul.f32 %v648, %v672
    %v676 = vadd.f32 %v675, %v674
    %v677 = vpack.c.bf16 %v676, %v676
    %v678 = vld [vmem:[#allocation2 + $0x100] sm:$0xf]
    %v679 = vld [vmem:[#allocation2 + $0x104] sm:$0xf]
    %v680 = vld [vmem:[#allocation2 + $0x108] sm:$0xf]
    %v681 = vld [vmem:[#allocation2 + $0x10c] sm:$0xf]
    %v682 = vld [vmem:[#allocation2 + $0x110] sm:$0xf]
    %v683 = vld [vmem:[#allocation2 + $0x114] sm:$0xf]
    %v684 = vld [vmem:[#allocation2 + $0x118] sm:$0xf]
    %v685 = vld [vmem:[#allocation2 + $0x11c] sm:$0xf]
    %v686 = vld [vmem:[#allocation2 + $0x120] sm:$0xf]
    %v687 = vld [vmem:[#allocation2 + $0x124] sm:$0xf]
    %v688 = vld [vmem:[#allocation2 + $0x128] sm:$0xf]
    %v689 = vld [vmem:[#allocation2 + $0x12c] sm:$0xf]
    %v690 = vld [vmem:[#allocation2 + $0x130] sm:$0xf]
    %v691 = vld [vmem:[#allocation2 + $0x134] sm:$0xf]
    %v692 = vld [vmem:[#allocation2 + $0x138] sm:$0xf]
    %v693 = vld [vmem:[#allocation2 + $0x13c] sm:$0xf]
    %v694 = vld [vmem:[%s4 + $0x11] ss:$0 sm:$0xff]
    %v711 = vunpack.c.l.b16 %v678
    %v712 = vunpack.c.l.b16 %v679
    %v713 = vunpack.c.l.b16 %v680
    %v714 = vunpack.c.l.b16 %v681
    %v715 = vunpack.c.l.b16 %v682
    %v716 = vunpack.c.l.b16 %v683
    %v717 = vunpack.c.l.b16 %v684
    %v718 = vunpack.c.l.b16 %v685
    %v719 = vunpack.c.l.b16 %v686
    %v720 = vunpack.c.l.b16 %v687
    %v721 = vunpack.c.l.b16 %v688
    %v722 = vunpack.c.l.b16 %v689
    %v723 = vunpack.c.l.b16 %v690
    %v724 = vunpack.c.l.b16 %v691
    %v725 = vunpack.c.l.b16 %v692
    %v726 = vunpack.c.l.b16 %v693
    %v727 = vpack.c.b16 %v712, %v711
    %v728 = vpack.c.b16 %v714, %v713
    %v729 = vpack.c.b16 %v716, %v715
    %v730 = vpack.c.b16 %v718, %v717
    %v731 = vpack.c.b16 %v720, %v719
    %v732 = vpack.c.b16 %v722, %v721
    %v733 = vpack.c.b16 %v724, %v723
    %v734 = vpack.c.b16 %v726, %v725
    %743 = vmatprep.subr.bf16.mxu0 0
    %744 = vmatpush1.bf16.msra.mxu0 %v727
    %745 = vmatprep.subr.bf16.mxu0 0
    %746 = vmatpush1.bf16.msra.mxu0 %v728
    %747 = vmatprep.subr.bf16.mxu0 0
    %748 = vmatpush1.bf16.msra.mxu0 %v729
    %749 = vmatprep.subr.bf16.mxu0 0
    %750 = vmatpush1.bf16.msra.mxu0 %v730
    %751 = vmatprep.subr.bf16.mxu0 0
    %752 = vmatpush1.bf16.msra.mxu0 %v731
    %753 = vmatprep.subr.bf16.mxu0 0
    %754 = vmatpush1.bf16.msra.mxu0 %v732
    %755 = vmatprep.subr.bf16.mxu0 0
    %756 = vmatpush1.bf16.msra.mxu0 %v733
    %757 = vmatprep.subr.bf16.mxu0 0
    %758 = vmatpush1.bf16.msra.mxu0 %v734
    %759 = vmatprep.subr.bf16.mxu0 0
    %760 = vmatpush1.bf16.msra.mxu0 0
    %761 = vmatprep.subr.bf16.mxu0 0
    %762 = vmatpush1.bf16.msra.mxu0 0
    %763 = vmatprep.subr.bf16.mxu0 0
    %764 = vmatpush1.bf16.msra.mxu0 0
    %765 = vmatprep.subr.bf16.mxu0 0
    %766 = vmatpush1.bf16.msra.mxu0 0
    %767 = vmatprep.subr.bf16.mxu0 0
    %768 = vmatpush1.bf16.msra.mxu0 0
    %769 = vmatprep.subr.bf16.mxu0 0
    %770 = vmatpush1.bf16.msra.mxu0 0
    %771 = vmatprep.subr.bf16.mxu0 0
    %772 = vmatpush1.bf16.msra.mxu0 0
    %773 = vmatprep.subr.bf16.mxu0 0
    %774 = vmatpush1.bf16.msra.mxu0 0
    %775 = vmatprep.mubr.bf16.mxu0 0
    %776 = vmatmul.mubr.bf16.gmra.mrb[0].mxu0 %v677
    %v777 = vpop.f32.mrb[0].mxu0
    %v778 = vadd.f32 %v694, %v777
    %v779 = vpop.f32.mrb[0].mxu0
    %v780 = vpop.f32.mrb[0].mxu0
    %v781 = vpop.f32.mrb[0].mxu0
    %782 = vdwg.mxu0
    %v783 = vmax.f32 %v778, 0.0
    %v784 = vld [vmem:[%s4 + $0x13] ss:$0 sm:$0xff]
    %v785 = vld [vmem:[%s4 + $0x14] ss:$0 sm:$0xff]
    %v786 = vmul.f32 %v783, %v39
    %v787 = vrot.slane %v786, 4
    %v788 = vadd.f32 %v786, %v787
    %v789 = vrot.slane %v788, 2
    %v790 = vadd.f32 %v788, %v789
    %v791 = vrot.slane %v790, 1
    %v792 = vadd.f32 %v790, %v791
    %v793 = vmul.f32 %v792, 0.5
    %v794 = vmul.f32 %v786, %v786
    %v795 = vrot.slane %v794, 4
    %v796 = vadd.f32 %v794, %v795
    %v797 = vrot.slane %v796, 2
    %v798 = vadd.f32 %v796, %v797
    %v799 = vrot.slane %v798, 1
    %v800 = vadd.f32 %v798, %v799
    %v801 = vmul.f32 %v800, 0.5
    %v802 = vmul.f32 %v793, %v793
    %v803 = vsub.f32 %v801, %v802
    %v804 = vmax.f32 %v803, 0.0
    %v805 = vadd.f32 %v804, 1e-05
    %v806 = vrsqrt.pop %v805
    %v807 = vmul.f32 %v784, %v806
    %v808 = vmul.f32 %v793, %v807
    %v809 = vsub.f32 %v785, %v808
    %v810 = vmul.f32 %v783, %v807
    %v811 = vadd.f32 %v810, %v809
    %v812 = vadd.f32 %v811, %v299
    %v813 = vpack.c.bf16 %v812, %v812
    %v814 = vld [vmem:[#allocation2 + $0x140] sm:$0xf]
    %v815 = vld [vmem:[#allocation2 + $0x144] sm:$0xf]
    %v816 = vld [vmem:[#allocation2 + $0x148] sm:$0xf]
    %v817 = vld [vmem:[#allocation2 + $0x14c] sm:$0xf]
    %v818 = vld [vmem:[#allocation2 + $0x150] sm:$0xf]
    %v819 = vld [vmem:[#allocation2 + $0x154] sm:$0xf]
    %v820 = vld [vmem:[#allocation2 + $0x158] sm:$0xf]
    %v821 = vld [vmem:[#allocation2 + $0x15c] sm:$0xf]
    %v822 = vld [vmem:[#allocation2 + $0x160] sm:$0xf]
    %v823 = vld [vmem:[#allocation2 + $0x164] sm:$0xf]
    %v824 = vld [vmem:[#allocation2 + $0x168] sm:$0xf]
    %v825 = vld [vmem:[#allocation2 + $0x16c] sm:$0xf]
    %v826 = vld [vmem:[#allocation2 + $0x170] sm:$0xf]
    %v827 = vld [vmem:[#allocation2 + $0x174] sm:$0xf]
    %v828 = vld [vmem:[#allocation2 + $0x178] sm:$0xf]
    %v829 = vld [vmem:[#allocation2 + $0x17c] sm:$0xf]
    %v830 = vld [vmem:[%s4 + $0x12] ss:$0 sm:$0xff]
    %v847 = vunpack.c.l.b16 %v814
    %v848 = vunpack.c.l.b16 %v815
    %v849 = vunpack.c.l.b16 %v816
    %v850 = vunpack.c.l.b16 %v817
    %v851 = vunpack.c.l.b16 %v818
    %v852 = vunpack.c.l.b16 %v819
    %v853 = vunpack.c.l.b16 %v820
    %v854 = vunpack.c.l.b16 %v821
    %v855 = vunpack.c.l.b16 %v822
    %v856 = vunpack.c.l.b16 %v823
    %v857 = vunpack.c.l.b16 %v824
    %v858 = vunpack.c.l.b16 %v825
    %v859 = vunpack.c.l.b16 %v826
    %v860 = vunpack.c.l.b16 %v827
    %v861 = vunpack.c.l.b16 %v828
    %v862 = vunpack.c.l.b16 %v829
    %v863 = vpack.c.b16 %v848, %v847
    %v864 = vpack.c.b16 %v850, %v849
    %v865 = vpack.c.b16 %v852, %v851
    %v866 = vpack.c.b16 %v854, %v853
    %v867 = vpack.c.b16 %v856, %v855
    %v868 = vpack.c.b16 %v858, %v857
    %v869 = vpack.c.b16 %v860, %v859
    %v870 = vpack.c.b16 %v862, %v861
    %879 = vmatprep.subr.bf16.mxu0 0
    %880 = vmatpush1.bf16.msra.mxu0 %v863
    %881 = vmatprep.subr.bf16.mxu0 0
    %882 = vmatpush1.bf16.msra.mxu0 %v864
    %883 = vmatprep.subr.bf16.mxu0 0
    %884 = vmatpush1.bf16.msra.mxu0 %v865
    %885 = vmatprep.subr.bf16.mxu0 0
    %886 = vmatpush1.bf16.msra.mxu0 %v866
    %887 = vmatprep.subr.bf16.mxu0 0
    %888 = vmatpush1.bf16.msra.mxu0 %v867
    %889 = vmatprep.subr.bf16.mxu0 0
    %890 = vmatpush1.bf16.msra.mxu0 %v868
    %891 = vmatprep.subr.bf16.mxu0 0
    %892 = vmatpush1.bf16.msra.mxu0 %v869
    %893 = vmatprep.subr.bf16.mxu0 0
    %894 = vmatpush1.bf16.msra.mxu0 %v870
    %895 = vmatprep.subr.bf16.mxu0 0
    %896 = vmatpush1.bf16.msra.mxu0 0
    %897 = vmatprep.subr.bf16.mxu0 0
    %898 = vmatpush1.bf16.msra.mxu0 0
    %899 = vmatprep.subr.bf16.mxu0 0
    %900 = vmatpush1.bf16.msra.mxu0 0
    %901 = vmatprep.subr.bf16.mxu0 0
    %902 = vmatpush1.bf16.msra.mxu0 0
    %903 = vmatprep.subr.bf16.mxu0 0
    %904 = vmatpush1.bf16.msra.mxu0 0
    %905 = vmatprep.subr.bf16.mxu0 0
    %906 = vmatpush1.bf16.msra.mxu0 0
    %907 = vmatprep.subr.bf16.mxu0 0
    %908 = vmatpush1.bf16.msra.mxu0 0
    %909 = vmatprep.subr.bf16.mxu0 0
    %910 = vmatpush1.bf16.msra.mxu0 0
    %911 = vmatprep.mubr.bf16.mxu0 0
    %912 = vmatmul.mubr.bf16.gmra.mrb[0].mxu0 %v813
    %v913 = vpop.f32.mrb[0].mxu0
    %v914 = vadd.f32 %v830, %v913
    %v915 = vpop.f32.mrb[0].mxu0
    %v916 = vpop.f32.mrb[0].mxu0
    %v917 = vpop.f32.mrb[0].mxu0
    %918 = vdwg.mxu0
    %v919 = vmax.f32 %v914, 0.0
    %v920 = vld [vmem:[%s4 + $0x15] ss:$0 sm:$0xff]
    %v921 = vld [vmem:[%s4 + $0x16] ss:$0 sm:$0xff]
    %v922 = vmul.f32 %v919, %v39
    %v923 = vrot.slane %v922, 4
    %v924 = vadd.f32 %v922, %v923
    %v925 = vrot.slane %v924, 2
    %v926 = vadd.f32 %v924, %v925
    %v927 = vrot.slane %v926, 1
    %v928 = vadd.f32 %v926, %v927
    %v929 = vmul.f32 %v928, 0.5
    %v930 = vmul.f32 %v922, %v922
    %v931 = vrot.slane %v930, 4
    %v932 = vadd.f32 %v930, %v931
    %v933 = vrot.slane %v932, 2
    %v934 = vadd.f32 %v932, %v933
    %v935 = vrot.slane %v934, 1
    %v936 = vadd.f32 %v934, %v935
    %v937 = vmul.f32 %v936, 0.5
    %v938 = vmul.f32 %v929, %v929
    %v939 = vsub.f32 %v937, %v938
    %v940 = vmax.f32 %v939, 0.0
    %v941 = vadd.f32 %v940, 1e-05
    %v942 = vrsqrt.pop %v941
    %v943 = vmul.f32 %v920, %v942
    %v944 = vmul.f32 %v929, %v943
    %v945 = vsub.f32 %v921, %v944
    %v946 = vmul.f32 %v919, %v943
    %v947 = vadd.f32 %v946, %v945
    %v948 = vpack.c.bf16 %v947, %v947
    %v949 = vld [vmem:[#allocation2 + $0x180] sm:$0xf]
    %v950 = vld [vmem:[#allocation2 + $0x184] sm:$0xf]
    %v951 = vld [vmem:[#allocation2 + $0x188] sm:$0xf]
    %v952 = vld [vmem:[#allocation2 + $0x18c] sm:$0xf]
    %v953 = vld [vmem:[#allocation2 + $0x190] sm:$0xf]
    %v954 = vld [vmem:[#allocation2 + $0x194] sm:$0xf]
    %v955 = vld [vmem:[#allocation2 + $0x198] sm:$0xf]
    %v956 = vld [vmem:[#allocation2 + $0x19c] sm:$0xf]
    %v957 = vld [vmem:[#allocation2 + $0x1a0] sm:$0xf]
    %v958 = vld [vmem:[#allocation2 + $0x1a4] sm:$0xf]
    %v959 = vld [vmem:[#allocation2 + $0x1a8] sm:$0xf]
    %v960 = vld [vmem:[#allocation2 + $0x1ac] sm:$0xf]
    %v961 = vld [vmem:[#allocation2 + $0x1b0] sm:$0xf]
    %v962 = vld [vmem:[#allocation2 + $0x1b4] sm:$0xf]
    %v963 = vld [vmem:[#allocation2 + $0x1b8] sm:$0xf]
    %v964 = vld [vmem:[#allocation2 + $0x1bc] sm:$0xf]
    %v965 = vld [vmem:[%s4 + $0x17] ss:$0 sm:$0xff]
    %v982 = vunpack.c.l.b16 %v949
    %v983 = vunpack.c.l.b16 %v950
    %v984 = vunpack.c.l.b16 %v951
    %v985 = vunpack.c.l.b16 %v952
    %v986 = vunpack.c.l.b16 %v953
    %v987 = vunpack.c.l.b16 %v954
    %v988 = vunpack.c.l.b16 %v955
    %v989 = vunpack.c.l.b16 %v956
    %v990 = vunpack.c.l.b16 %v957
    %v991 = vunpack.c.l.b16 %v958
    %v992 = vunpack.c.l.b16 %v959
    %v993 = vunpack.c.l.b16 %v960
    %v994 = vunpack.c.l.b16 %v961
    %v995 = vunpack.c.l.b16 %v962
    %v996 = vunpack.c.l.b16 %v963
    %v997 = vunpack.c.l.b16 %v964
    %v998 = vpack.c.b16 %v983, %v982
    %v999 = vpack.c.b16 %v985, %v984
    %v1000 = vpack.c.b16 %v987, %v986
    %v1001 = vpack.c.b16 %v989, %v988
    %v1002 = vpack.c.b16 %v991, %v990
    %v1003 = vpack.c.b16 %v993, %v992
    %v1004 = vpack.c.b16 %v995, %v994
    %v1005 = vpack.c.b16 %v997, %v996
    %1014 = vmatprep.subr.bf16.mxu0 0
    %1015 = vmatpush1.bf16.msra.mxu0 %v998
    %1016 = vmatprep.subr.bf16.mxu0 0
    %1017 = vmatpush1.bf16.msra.mxu0 %v999
    %1018 = vmatprep.subr.bf16.mxu0 0
    %1019 = vmatpush1.bf16.msra.mxu0 %v1000
    %1020 = vmatprep.subr.bf16.mxu0 0
    %1021 = vmatpush1.bf16.msra.mxu0 %v1001
    %1022 = vmatprep.subr.bf16.mxu0 0
    %1023 = vmatpush1.bf16.msra.mxu0 %v1002
    %1024 = vmatprep.subr.bf16.mxu0 0
    %1025 = vmatpush1.bf16.msra.mxu0 %v1003
    %1026 = vmatprep.subr.bf16.mxu0 0
    %1027 = vmatpush1.bf16.msra.mxu0 %v1004
    %1028 = vmatprep.subr.bf16.mxu0 0
    %1029 = vmatpush1.bf16.msra.mxu0 %v1005
    %1030 = vmatprep.subr.bf16.mxu0 0
    %1031 = vmatpush1.bf16.msra.mxu0 0
    %1032 = vmatprep.subr.bf16.mxu0 0
    %1033 = vmatpush1.bf16.msra.mxu0 0
    %1034 = vmatprep.subr.bf16.mxu0 0
    %1035 = vmatpush1.bf16.msra.mxu0 0
    %1036 = vmatprep.subr.bf16.mxu0 0
    %1037 = vmatpush1.bf16.msra.mxu0 0
    %1038 = vmatprep.subr.bf16.mxu0 0
    %1039 = vmatpush1.bf16.msra.mxu0 0
    %1040 = vmatprep.subr.bf16.mxu0 0
    %1041 = vmatpush1.bf16.msra.mxu0 0
    %1042 = vmatprep.subr.bf16.mxu0 0
    %1043 = vmatpush1.bf16.msra.mxu0 0
    %1044 = vmatprep.subr.bf16.mxu0 0
    %1045 = vmatpush1.bf16.msra.mxu0 0
    %1046 = vmatprep.mubr.bf16.mxu0 0
    %1047 = vmatmul.mubr.bf16.gmra.mrb[0].mxu0 %v948
    %v1048 = vpop.f32.mrb[0].mxu0
    %v1049 = vadd.f32 %v965, %v1048
    %v1050 = vpop.f32.mrb[0].mxu0
    %v1051 = vpop.f32.mrb[0].mxu0
    %v1052 = vpop.f32.mrb[0].mxu0
    %1053 = vdwg.mxu0
    %1054 = vst [vmem:[%s5] sm:$0xff] %v1049
    // Predicated region
    $region26: #{simple_mlp_forward.1} parent=1 // pred_check
      _
    $region27: #{simple_mlp_forward.1} parent=1 // pred_check_branch
      %1056 = sbr.rel (0) target = $region29
    $region28: #{simple_mlp_forward.1} parent=1 // pred_region
      _
    $region29: #{simple_mlp_forward.1} parent=1 // pred_fallthru
      _
    // Predicated region
    $region30: #{simple_mlp_forward.1} parent=1 // pred_check
      _
    $region31: #{simple_mlp_forward.1} parent=1 // pred_check_branch
      %1058 = sbr.rel (0) target = $region33
    $region32: #{simple_mlp_forward.1} parent=1 // pred_region
      _
    $region33: #{simple_mlp_forward.1} parent=1 // pred_fallthru
      _
    %1059 = vsyncpa [#allocation3], 1

</llo_original>
